<compile_context>
chip_gen: v5e
topology: v5e:2x2
jax: 0.10.0
libtpu: 0.0.40
codegen_flags: <defaults>
</compile_context>

<pallas_src>
import functools

import jax
import jax.numpy as jnp
from jax.experimental import pallas as pl
from jax.experimental.pallas import tpu as pltpu

LN_EPS = 1e-5  # PyTorch LayerNorm default


def _proj_norm_kernel(x_ref, w_ref, b_ref, g_ref, beta_ref, out_ref, *,
                      tokens_per_tile, d):
    """One grid step = one (K, tn) weight tile = `tokens_per_tile` tokens.

    x_ref:    (B, K)   image embeddings (compute dtype)
    w_ref:    (K, tn)  fused, pre-transposed weight tile, tn = tokens_per_tile*d
    b_ref:    (1, tn)  fused bias tile (f32, pre-cast in wrapper)
    g_ref:    (1, d)   LayerNorm gamma (f32)
    beta_ref: (1, d)   LayerNorm beta  (f32)
    out_ref:  (B, tn)  lane-dense output tile
    """
    x = x_ref[...]
    g = g_ref[...]
    bt = beta_ref[...]
    # Per-token matmul + LayerNorm: the live f32 intermediate is only (B, d),
    # keeping the LN (VPU/XLU) work out of the spill path even at d = 2048.
    for t in range(tokens_per_tile):  # static unroll, tokens_per_tile is tiny
        lo, hi = t * d, (t + 1) * d
        y = jnp.dot(x, w_ref[:, lo:hi], preferred_element_type=jnp.float32)
        y = y + b_ref[:, lo:hi]                                   # (B, d) f32
        mean = jnp.mean(y, axis=-1, keepdims=True)
        centered = y - mean
        var = jnp.mean(centered * centered, axis=-1, keepdims=True)
        normed = centered * jax.lax.rsqrt(var + LN_EPS)
        out_ref[:, lo:hi] = (normed * g + bt).astype(out_ref.dtype)


def image_proj_model_forward(image_embeds, proj_weight, proj_bias, gamma, beta,
                             *, tokens, compute_dtype=jnp.bfloat16,
                             max_weight_tile_bytes=8 << 20):
    """Forward pass of ImageProjModel.

    image_embeds: (B, K)      clip image embeddings
    proj_weight:  (T*D, K)    torch.nn.Linear weight (out_features, in_features)
    proj_bias:    (T*D,)      torch.nn.Linear bias
    gamma, beta:  (D,)        LayerNorm affine params
    Returns (B, T, D) in the dtype of image_embeds.
    """
    B, K = image_embeds.shape
    TD, K2 = proj_weight.shape
    assert K == K2, "weight in_features must match image_embeds feature dim"
    assert TD % tokens == 0
    D = TD // tokens
    # Lane-dense unmasked stores require D % 128 == 0 (true for 768/1024/2048).
    assert D % 128 == 0, "cross_attention_dim must be a multiple of 128"

    out_dtype = image_embeds.dtype

    # One-time wrapper-side prep (outside the hot kernel): transpose to the
    # fused (K, T*D) layout, cast matmul operands to the compute dtype, and
    # pre-cast the small params to f32 so the kernel never re-casts per step.
    x = image_embeds.astype(compute_dtype)
    w_ktd = jnp.transpose(proj_weight).astype(compute_dtype)      # (K, T*D)
    bias2 = proj_bias.reshape(1, TD).astype(jnp.float32)
    gamma2 = gamma.reshape(1, D).astype(jnp.float32)
    beta2 = beta.reshape(1, D).astype(jnp.float32)

    w_bytes = jnp.dtype(compute_dtype).itemsize
    o_bytes = jnp.dtype(out_dtype).itemsize

    # Largest whole-token tile whose weight slab fits the per-tile budget, so
    # the double-buffered weight DMA stays comfortably inside scoped VMEM on
    # v5e/v6e/v7x at production shapes while tiles stay as big as possible
    # (per-grid-step overhead ~0.35us, so bigger tiles are better).
    tokens_per_tile = 1
    for c in range(1, tokens + 1):
        if tokens % c == 0 and K * c * D * w_bytes <= max_weight_tile_bytes:
            tokens_per_tile = c
    # TODO(synk): if even a single-token (K, D) weight tile ever exceeds the
    # budget, additionally tile K with an f32 accumulator; not needed at
    # IP-Adapter sizes (K<=1280, D<=2048).

    tn = tokens_per_tile * D
    n_tiles = TD // tn

    # Explicit scoped-VMEM limit: double-buffered blocks + headroom.
    per_step_bytes = (K * tn * w_bytes      # weight tile
                      + B * K * w_bytes     # x
                      + tn * 4              # bias tile
                      + 2 * D * 4           # gamma + beta
                      + B * tn * o_bytes)   # output tile
    vmem_limit = int(2 * per_step_bytes + (4 << 20))

    cost = pl.CostEstimate(
        flops=2 * B * K * TD,
        transcendentals=B * tokens,
        bytes_accessed=(K * TD + B * K) * w_bytes + TD * 4 + 2 * D * 4
        + B * TD * o_bytes,
    )

    kernel = functools.partial(_proj_norm_kernel,
                               tokens_per_tile=tokens_per_tile, d=D)

    out_flat = pl.pallas_call(
        kernel,
        out_shape=jax.ShapeDtypeStruct((B, TD), out_dtype),
        grid_spec=pltpu.PrefetchScalarGridSpec(
            num_scalar_prefetch=0,
            grid=(n_tiles,),
            in_specs=[
                pl.BlockSpec((B, K), lambda j: (0, 0)),    # x (stays resident)
                pl.BlockSpec((K, tn), lambda j: (0, j)),   # weight tile (pipelined)
                pl.BlockSpec((1, tn), lambda j: (0, j)),   # bias tile
                pl.BlockSpec((1, D), lambda j: (0, 0)),    # gamma
                pl.BlockSpec((1, D), lambda j: (0, 0)),    # beta
            ],
            out_specs=pl.BlockSpec((B, tn), lambda j: (0, j)),
        ),
        compiler_params=pltpu.CompilerParams(
            dimension_semantics=("parallel",),   # disjoint tiles -> 2 TCs on v7x
            vmem_limit_bytes=vmem_limit,
        ),
        cost_estimate=cost,
    )(x, w_ktd, bias2, gamma2, beta2)

    # Cheap wrapper-side reshape (splits the lane-dense last dim only).
    return out_flat.reshape(B, tokens, D)


def reference_forward(image_embeds, proj_weight, proj_bias, gamma, beta, *,
                      tokens, matmul_input_dtype=jnp.float32):
    """Pure-JAX reference mirroring the PyTorch module semantics."""
    B, K = image_embeds.shape
    TD = proj_weight.shape[0]
    D = TD // tokens
    x = image_embeds.astype(matmul_input_dtype).astype(jnp.float32)
    w = proj_weight.astype(matmul_input_dtype).astype(jnp.float32)
    y = x @ w.T + proj_bias.astype(jnp.float32)
    y = y.reshape(B, tokens, D)
    mean = y.mean(-1, keepdims=True)
    var = ((y - mean) ** 2).mean(-1, keepdims=True)
    normed = (y - mean) / jnp.sqrt(var + LN_EPS)
    out = normed * gamma.astype(jnp.float32) + beta.astype(jnp.float32)
    return out.astype(image_embeds.dtype)


if __name__ == "__main__":
    # Small, TPU-friendly synthetic shapes consistent with the module:
    #   clip_embeddings_dim (K) = 256, cross_attention_dim (D) = 128,
    #   clip_extra_context_tokens (T) = 4, batch (B) = 8.
    B, K, D, T = 8, 256, 128, 4

    key = jax.random.PRNGKey(0)
    k_x, k_w, k_b, k_g, k_bt = jax.random.split(key, 5)

    image_embeds = jax.random.normal(k_x, (B, K), dtype=jnp.float32)
    # PyTorch Linear layout: (out_features, in_features) = (T*D, K).
    proj_weight = jax.random.normal(k_w, (T * D, K), dtype=jnp.float32) / jnp.sqrt(K)
    proj_bias = 0.02 * jax.random.normal(k_b, (T * D,), dtype=jnp.float32)
    gamma = 1.0 + 0.1 * jax.random.normal(k_g, (D,), dtype=jnp.float32)
    beta = 0.05 * jax.random.normal(k_bt, (D,), dtype=jnp.float32)

    ref_f32 = reference_forward(image_embeds, proj_weight, proj_bias, gamma,
                                beta, tokens=T)
    ref_bf16 = reference_forward(image_embeds, proj_weight, proj_bias, gamma,
                                 beta, tokens=T,
                                 matmul_input_dtype=jnp.bfloat16)

    # 1) f32 compute path (default budget -> whole weight in one tile here).
    out_f32 = image_proj_model_forward(image_embeds, proj_weight, proj_bias,
                                       gamma, beta, tokens=T,
                                       compute_dtype=jnp.float32)
    out_f32 = jax.block_until_ready(out_f32)
    assert out_f32.shape == (B, T, D)
    assert jnp.allclose(out_f32, ref_f32, atol=3e-2, rtol=3e-2), "f32 mismatch"

    # 2) f32 path with a tiny per-tile weight budget -> forces grid=(4,), so
    #    the pipelined per-token tiling is exercised even at toy shapes.
    out_tiled = image_proj_model_forward(image_embeds, proj_weight, proj_bias,
                                         gamma, beta, tokens=T,
                                         compute_dtype=jnp.float32,
                                         max_weight_tile_bytes=K * D * 4)
    out_tiled = jax.block_until_ready(out_tiled)
    assert jnp.allclose(out_tiled, ref_f32, atol=3e-2, rtol=3e-2), "tiled mismatch"

    # 3) bf16 compute path (production default: halves weight HBM traffic).
    out_bf16 = image_proj_model_forward(image_embeds, proj_weight, proj_bias,
                                        gamma, beta, tokens=T)
    out_bf16 = jax.block_until_ready(out_bf16)
    assert jnp.allclose(out_bf16, ref_bf16, atol=3e-2, rtol=3e-2), "bf16 mismatch"
    assert jnp.allclose(out_bf16, ref_f32, atol=1e-1, rtol=1e-1), "bf16 vs f32 drift"

    print("KERNEL_OK")
</pallas_src>

<mosaic_0001>
module attributes {stable_mosaic.version = 11 : i64} {
  func.func @_proj_norm_kernel(%arg0: i32, %arg1: memref<8x256xf32, #tpu.memory_space<vmem>>, %arg2: memref<256x512xf32, #tpu.memory_space<vmem>>, %arg3: memref<1x512xf32, #tpu.memory_space<vmem>>, %arg4: memref<1x128xf32, #tpu.memory_space<vmem>>, %arg5: memref<1x128xf32, #tpu.memory_space<vmem>>, %arg6: memref<8x512xf32, #tpu.memory_space<vmem>>) attributes {dimension_semantics = [#tpu.dimension_semantics<parallel>], iteration_bounds = array<i64: 1>, scalar_prefetch = 0 : i64, scratch_operands = 0 : i64, tpu.core_type = #tpu.core_type<tc>, window_params = [{pipeline_mode = #tpu.pipeline_mode<synchronous>, transform_indices = @transform_0, window_bounds = array<i64: 8, 256>}, {transform_indices = @transform_1, window_bounds = array<i64: 256, 512>}, {transform_indices = @transform_2, window_bounds = array<i64: 1, 512>}, {pipeline_mode = #tpu.pipeline_mode<synchronous>, transform_indices = @transform_3, window_bounds = array<i64: 1, 128>}, {pipeline_mode = #tpu.pipeline_mode<synchronous>, transform_indices = @transform_4, window_bounds = array<i64: 1, 128>}, {transform_indices = @transform_5, window_bounds = array<i64: 8, 512>}]} {
    %c0 = arith.constant 0 : index
    %c0_0 = arith.constant 0 : index
    %0 = vector.load %arg1[%c0, %c0_0] : memref<8x256xf32, #tpu.memory_space<vmem>>, vector<8x256xf32>
    %c0_1 = arith.constant 0 : index
    %c0_2 = arith.constant 0 : index
    %1 = vector.load %arg4[%c0_1, %c0_2] : memref<1x128xf32, #tpu.memory_space<vmem>>, vector<1x128xf32>
    %c0_3 = arith.constant 0 : index
    %c0_4 = arith.constant 0 : index
    %2 = vector.load %arg5[%c0_3, %c0_4] : memref<1x128xf32, #tpu.memory_space<vmem>>, vector<1x128xf32>
    %c0_5 = arith.constant 0 : index
    %c0_6 = arith.constant 0 : index
    %3 = vector.load %arg2[%c0_5, %c0_6] : memref<256x512xf32, #tpu.memory_space<vmem>>, vector<256x128xf32>
    %cst = arith.constant dense<0.000000e+00> : vector<8x128xf32>
    %4 = tpu.matmul %0, %3, %cst {dimension_numbers = #tpu.dot_dimension_numbers<[1], [0], [0], [1], [0, 0, 1, 1], [], []>} : vector<8x256xf32>, vector<256x128xf32>, vector<8x128xf32> -> vector<8x128xf32>
    %c0_7 = arith.constant 0 : index
    %c0_8 = arith.constant 0 : index
    %5 = vector.load %arg3[%c0_7, %c0_8] : memref<1x512xf32, #tpu.memory_space<vmem>>, vector<1x128xf32>
    %6 = vector.broadcast %5 : vector<1x128xf32> to vector<8x128xf32>
    %7 = arith.addf %4, %6 : vector<8x128xf32>
    %cst_9 = arith.constant dense<0.000000e+00> : vector<8xf32>
    %8 = vector.multi_reduction <add>, %7, %cst_9 [1] : vector<8x128xf32> to vector<8xf32>
    %9 = vector.shape_cast %8 : vector<8xf32> to vector<8x1xf32>
    %cst_10 = arith.constant 1.280000e+02 : f32
    %10 = vector.broadcast %cst_10 : f32 to vector<8x1xf32>
    %11 = arith.divf %9, %10 : vector<8x1xf32>
    %12 = vector.broadcast %11 : vector<8x1xf32> to vector<8x128xf32>
    %13 = arith.subf %7, %12 : vector<8x128xf32>
    %14 = arith.mulf %13, %13 : vector<8x128xf32>
    %cst_11 = arith.constant dense<0.000000e+00> : vector<8xf32>
    %15 = vector.multi_reduction <add>, %14, %cst_11 [1] : vector<8x128xf32> to vector<8xf32>
    %16 = vector.shape_cast %15 : vector<8xf32> to vector<8x1xf32>
    %cst_12 = arith.constant 1.280000e+02 : f32
    %17 = vector.broadcast %cst_12 : f32 to vector<8x1xf32>
    %18 = arith.divf %16, %17 : vector<8x1xf32>
    %cst_13 = arith.constant 9.99999974E-6 : f32
    %19 = vector.broadcast %cst_13 : f32 to vector<8x1xf32>
    %20 = arith.addf %18, %19 : vector<8x1xf32>
    %21 = math.rsqrt %20 : vector<8x1xf32>
    %22 = vector.broadcast %21 : vector<8x1xf32> to vector<8x128xf32>
    %23 = arith.mulf %13, %22 : vector<8x128xf32>
    %24 = vector.broadcast %1 : vector<1x128xf32> to vector<8x128xf32>
    %25 = arith.mulf %23, %24 : vector<8x128xf32>
    %26 = vector.broadcast %2 : vector<1x128xf32> to vector<8x128xf32>
    %27 = arith.addf %25, %26 : vector<8x128xf32>
    %c0_14 = arith.constant 0 : index
    %c0_15 = arith.constant 0 : index
    %28 = vector.load %arg6[%c0_14, %c0_15] : memref<8x512xf32, #tpu.memory_space<vmem>>, vector<8x128xf32>
    tpu.vector_store %arg6[%c0_14, %c0_15], %27 {strides = array<i32>} : memref<8x512xf32, #tpu.memory_space<vmem>>, vector<8x128xf32>,
    %c0_16 = arith.constant 0 : index
    %c128 = arith.constant 128 : index
    %29 = vector.load %arg2[%c0_16, %c128] : memref<256x512xf32, #tpu.memory_space<vmem>>, vector<256x128xf32>
    %cst_17 = arith.constant dense<0.000000e+00> : vector<8x128xf32>
    %30 = tpu.matmul %0, %29, %cst_17 {dimension_numbers = #tpu.dot_dimension_numbers<[1], [0], [0], [1], [0, 0, 1, 1], [], []>} : vector<8x256xf32>, vector<256x128xf32>, vector<8x128xf32> -> vector<8x128xf32>
    %c0_18 = arith.constant 0 : index
    %c128_19 = arith.constant 128 : index
    %31 = vector.load %arg3[%c0_18, %c128_19] : memref<1x512xf32, #tpu.memory_space<vmem>>, vector<1x128xf32>
    %32 = vector.broadcast %31 : vector<1x128xf32> to vector<8x128xf32>
    %33 = arith.addf %30, %32 : vector<8x128xf32>
    %cst_20 = arith.constant dense<0.000000e+00> : vector<8xf32>
    %34 = vector.multi_reduction <add>, %33, %cst_20 [1] : vector<8x128xf32> to vector<8xf32>
    %35 = vector.shape_cast %34 : vector<8xf32> to vector<8x1xf32>
    %cst_21 = arith.constant 1.280000e+02 : f32
    %36 = vector.broadcast %cst_21 : f32 to vector<8x1xf32>
    %37 = arith.divf %35, %36 : vector<8x1xf32>
    %38 = vector.broadcast %37 : vector<8x1xf32> to vector<8x128xf32>
    %39 = arith.subf %33, %38 : vector<8x128xf32>
    %40 = arith.mulf %39, %39 : vector<8x128xf32>
    %cst_22 = arith.constant dense<0.000000e+00> : vector<8xf32>
    %41 = vector.multi_reduction <add>, %40, %cst_22 [1] : vector<8x128xf32> to vector<8xf32>
    %42 = vector.shape_cast %41 : vector<8xf32> to vector<8x1xf32>
    %cst_23 = arith.constant 1.280000e+02 : f32
    %43 = vector.broadcast %cst_23 : f32 to vector<8x1xf32>
    %44 = arith.divf %42, %43 : vector<8x1xf32>
    %cst_24 = arith.constant 9.99999974E-6 : f32
    %45 = vector.broadcast %cst_24 : f32 to vector<8x1xf32>
    %46 = arith.addf %44, %45 : vector<8x1xf32>
    %47 = math.rsqrt %46 : vector<8x1xf32>
    %48 = vector.broadcast %47 : vector<8x1xf32> to vector<8x128xf32>
    %49 = arith.mulf %39, %48 : vector<8x128xf32>
    %50 = vector.broadcast %1 : vector<1x128xf32> to vector<8x128xf32>
    %51 = arith.mulf %49, %50 : vector<8x128xf32>
    %52 = vector.broadcast %2 : vector<1x128xf32> to vector<8x128xf32>
    %53 = arith.addf %51, %52 : vector<8x128xf32>
    %c0_25 = arith.constant 0 : index
    %c128_26 = arith.constant 128 : index
    %54 = vector.load %arg6[%c0_25, %c128_26] : memref<8x512xf32, #tpu.memory_space<vmem>>, vector<8x128xf32>
    tpu.vector_store %arg6[%c0_25, %c128_26], %53 {strides = array<i32>} : memref<8x512xf32, #tpu.memory_space<vmem>>, vector<8x128xf32>,
    %c0_27 = arith.constant 0 : index
    %c256 = arith.constant 256 : index
    %55 = vector.load %arg2[%c0_27, %c256] : memref<256x512xf32, #tpu.memory_space<vmem>>, vector<256x128xf32>
    %cst_28 = arith.constant dense<0.000000e+00> : vector<8x128xf32>
    %56 = tpu.matmul %0, %55, %cst_28 {dimension_numbers = #tpu.dot_dimension_numbers<[1], [0], [0], [1], [0, 0, 1, 1], [], []>} : vector<8x256xf32>, vector<256x128xf32>, vector<8x128xf32> -> vector<8x128xf32>
    %c0_29 = arith.constant 0 : index
    %c256_30 = arith.constant 256 : index
    %57 = vector.load %arg3[%c0_29, %c256_30] : memref<1x512xf32, #tpu.memory_space<vmem>>, vector<1x128xf32>
    %58 = vector.broadcast %57 : vector<1x128xf32> to vector<8x128xf32>
    %59 = arith.addf %56, %58 : vector<8x128xf32>
    %cst_31 = arith.constant dense<0.000000e+00> : vector<8xf32>
    %60 = vector.multi_reduction <add>, %59, %cst_31 [1] : vector<8x128xf32> to vector<8xf32>
    %61 = vector.shape_cast %60 : vector<8xf32> to vector<8x1xf32>
    %cst_32 = arith.constant 1.280000e+02 : f32
    %62 = vector.broadcast %cst_32 : f32 to vector<8x1xf32>
    %63 = arith.divf %61, %62 : vector<8x1xf32>
    %64 = vector.broadcast %63 : vector<8x1xf32> to vector<8x128xf32>
    %65 = arith.subf %59, %64 : vector<8x128xf32>
    %66 = arith.mulf %65, %65 : vector<8x128xf32>
    %cst_33 = arith.constant dense<0.000000e+00> : vector<8xf32>
    %67 = vector.multi_reduction <add>, %66, %cst_33 [1] : vector<8x128xf32> to vector<8xf32>
    %68 = vector.shape_cast %67 : vector<8xf32> to vector<8x1xf32>
    %cst_34 = arith.constant 1.280000e+02 : f32
    %69 = vector.broadcast %cst_34 : f32 to vector<8x1xf32>
    %70 = arith.divf %68, %69 : vector<8x1xf32>
    %cst_35 = arith.constant 9.99999974E-6 : f32
    %71 = vector.broadcast %cst_35 : f32 to vector<8x1xf32>
    %72 = arith.addf %70, %71 : vector<8x1xf32>
    %73 = math.rsqrt %72 : vector<8x1xf32>
    %74 = vector.broadcast %73 : vector<8x1xf32> to vector<8x128xf32>
    %75 = arith.mulf %65, %74 : vector<8x128xf32>
    %76 = vector.broadcast %1 : vector<1x128xf32> to vector<8x128xf32>
    %77 = arith.mulf %75, %76 : vector<8x128xf32>
    %78 = vector.broadcast %2 : vector<1x128xf32> to vector<8x128xf32>
    %79 = arith.addf %77, %78 : vector<8x128xf32>
    %c0_36 = arith.constant 0 : index
    %c256_37 = arith.constant 256 : index
    %80 = vector.load %arg6[%c0_36, %c256_37] : memref<8x512xf32, #tpu.memory_space<vmem>>, vector<8x128xf32>
    tpu.vector_store %arg6[%c0_36, %c256_37], %79 {strides = array<i32>} : memref<8x512xf32, #tpu.memory_space<vmem>>, vector<8x128xf32>,
    %c0_38 = arith.constant 0 : index
    %c384 = arith.constant 384 : index
    %81 = vector.load %arg2[%c0_38, %c384] : memref<256x512xf32, #tpu.memory_space<vmem>>, vector<256x128xf32>
    %cst_39 = arith.constant dense<0.000000e+00> : vector<8x128xf32>
    %82 = tpu.matmul %0, %81, %cst_39 {dimension_numbers = #tpu.dot_dimension_numbers<[1], [0], [0], [1], [0, 0, 1, 1], [], []>} : vector<8x256xf32>, vector<256x128xf32>, vector<8x128xf32> -> vector<8x128xf32>
    %c0_40 = arith.constant 0 : index
    %c384_41 = arith.constant 384 : index
    %83 = vector.load %arg3[%c0_40, %c384_41] : memref<1x512xf32, #tpu.memory_space<vmem>>, vector<1x128xf32>
    %84 = vector.broadcast %83 : vector<1x128xf32> to vector<8x128xf32>
    %85 = arith.addf %82, %84 : vector<8x128xf32>
    %cst_42 = arith.constant dense<0.000000e+00> : vector<8xf32>
    %86 = vector.multi_reduction <add>, %85, %cst_42 [1] : vector<8x128xf32> to vector<8xf32>
    %87 = vector.shape_cast %86 : vector<8xf32> to vector<8x1xf32>
    %cst_43 = arith.constant 1.280000e+02 : f32
    %88 = vector.broadcast %cst_43 : f32 to vector<8x1xf32>
    %89 = arith.divf %87, %88 : vector<8x1xf32>
    %90 = vector.broadcast %89 : vector<8x1xf32> to vector<8x128xf32>
    %91 = arith.subf %85, %90 : vector<8x128xf32>
    %92 = arith.mulf %91, %91 : vector<8x128xf32>
    %cst_44 = arith.constant dense<0.000000e+00> : vector<8xf32>
    %93 = vector.multi_reduction <add>, %92, %cst_44 [1] : vector<8x128xf32> to vector<8xf32>
    %94 = vector.shape_cast %93 : vector<8xf32> to vector<8x1xf32>
    %cst_45 = arith.constant 1.280000e+02 : f32
    %95 = vector.broadcast %cst_45 : f32 to vector<8x1xf32>
    %96 = arith.divf %94, %95 : vector<8x1xf32>
    %cst_46 = arith.constant 9.99999974E-6 : f32
    %97 = vector.broadcast %cst_46 : f32 to vector<8x1xf32>
    %98 = arith.addf %96, %97 : vector<8x1xf32>
    %99 = math.rsqrt %98 : vector<8x1xf32>
    %100 = vector.broadcast %99 : vector<8x1xf32> to vector<8x128xf32>
    %101 = arith.mulf %91, %100 : vector<8x128xf32>
    %102 = vector.broadcast %1 : vector<1x128xf32> to vector<8x128xf32>
    %103 = arith.mulf %101, %102 : vector<8x128xf32>
    %104 = vector.broadcast %2 : vector<1x128xf32> to vector<8x128xf32>
    %105 = arith.addf %103, %104 : vector<8x128xf32>
    %c0_47 = arith.constant 0 : index
    %c384_48 = arith.constant 384 : index
    %106 = vector.load %arg6[%c0_47, %c384_48] : memref<8x512xf32, #tpu.memory_space<vmem>>, vector<8x128xf32>
    tpu.vector_store %arg6[%c0_47, %c384_48], %105 {strides = array<i32>} : memref<8x512xf32, #tpu.memory_space<vmem>>, vector<8x128xf32>,
    return
  }
  func.func @transform_0(%arg0: i32) -> (i32, i32) {
    %c0_i32 = arith.constant 0 : i32
    %c0_i32_0 = arith.constant 0 : i32
    %c0_i32_1 = arith.constant 0 : i32
    return %c0_i32, %c0_i32_0 : i32, i32
  }
  func.func @transform_1(%arg0: i32) -> (i32, i32) {
    %c0_i32 = arith.constant 0 : i32
    %c0_i32_0 = arith.constant 0 : i32
    return %c0_i32, %arg0 : i32, i32
  }
  func.func @transform_2(%arg0: i32) -> (i32, i32) {
    %c0_i32 = arith.constant 0 : i32
    %c0_i32_0 = arith.constant 0 : i32
    return %c0_i32, %arg0 : i32, i32
  }
  func.func @transform_3(%arg0: i32) -> (i32, i32) {
    %c0_i32 = arith.constant 0 : i32
    %c0_i32_0 = arith.constant 0 : i32
    %c0_i32_1 = arith.constant 0 : i32
    return %c0_i32, %c0_i32_0 : i32, i32
  }
  func.func @transform_4(%arg0: i32) -> (i32, i32) {
    %c0_i32 = arith.constant 0 : i32
    %c0_i32_0 = arith.constant 0 : i32
    %c0_i32_1 = arith.constant 0 : i32
    return %c0_i32, %c0_i32_0 : i32, i32
  }
  func.func @transform_5(%arg0: i32) -> (i32, i32) {
    %c0_i32 = arith.constant 0 : i32
    %c0_i32_0 = arith.constant 0 : i32
    return %c0_i32, %arg0 : i32, i32
  }
}

</mosaic_0001>

<llo_original>
// kernel: tpu_custom_call.1
$region0: #{tpu_custom_call.1}
  #allocation0 [shape = 'u32[]', space=smem, size = 0x4, offset = 0x4, fixed_abs, tag = 'smem constant byte address 0x4 - core index']
  #allocation1 [shape = 'u32[72,128]{1,0:T(1,128)}', space=vmem, size = 0x9000, scoped, tag = 'internal scratch']
  %s0 = inlined_call_operand.hbm [shape: f32[8,256], index: 0, kind: input, shape index: {}]
  %s1 = inlined_call_operand.hbm [shape: f32[256,512], index: 1, kind: input, shape index: {}]
  %s2 = inlined_call_operand.hbm [shape: f32[1,512], index: 2, kind: input, shape index: {}]
  %s3 = inlined_call_operand.vmem [shape: f32[1,128], index: 3, kind: input, shape index: {}]
  %s4 = inlined_call_operand.vmem [shape: f32[1,128], index: 4, kind: input, shape index: {}]
  %s5 = inlined_call_operand.hbm [shape: f32[8,512], index: 5, kind: output, shape index: {}]
  %s6 = sld [smem:[#allocation0]]
  $region42: #{tpu_custom_call.1} parent=0
    _
  %s8 = ssub.s32 1, %s6
  %s9 = scalar_select 0, %s8, %s6
  $region1: #{tpu_custom_call.1} parent=0
    #allocation2 [shape = 'u8[8192]{0}', space=vmem, size = 0x2000, scoped, tag = 'input window, operand 0, single buffered']
    #allocation3 [shape = 's32[1]{0}', space=sflag, size = 0x4, scoped, tag = 'scoped memory for tpu_custom_call.1']
    #allocation4 [shape = 's32[1]{0}', space=sflag, size = 0x4, scoped, tag = 'scoped memory for tpu_custom_call.1']
    #allocation5 [shape = 'u8[524288]{0}', space=vmem, size = 0x80000, scoped, tag = 'input window, operand 1, single buffered']
    #allocation6 [shape = 's32[1]{0}', space=sflag, size = 0x4, scoped, tag = 'scoped memory for tpu_custom_call.1']
    #allocation7 [shape = 'u8[2048]{0}', space=vmem, size = 0x800, scoped, tag = 'input window, operand 2, single buffered']
    #allocation8 [shape = 'u8[16384]{0}', space=vmem, size = 0x4000, scoped, tag = 'output window, operand 0, single buffered']
    %10 = vsyncpa [#allocation3], 0
    %11 = vsyncpa [#allocation6], 0
    %12 = vsyncpa [#allocation4], 0
    // Predicated region
    $region2: #{tpu_custom_call.1} parent=1 // pred_check
      _
    $region3: #{tpu_custom_call.1} parent=1 // pred_check_branch
      %14 = sbr.rel (0) target = $region5
    $region4: #{tpu_custom_call.1} parent=1 // pred_region
      %16 = vsyncadd [#allocation3], 0
      %s18 = sshll.u32 %s0, 4
      %s19 = int_to_ptr.hbm [resolvable:$true] %s18
      %s20 = sshll.u32 [#allocation2], 4
      %s21 = int_to_ptr.vmem [resolvable:$true] %s20
      %23 = dma.hbm_to_vmem [thread:$0]  %s19, 256, %s21, [#allocation3]
    $region5: #{tpu_custom_call.1} parent=1 // pred_fallthru
      _
    // Predicated region
    $region6: #{tpu_custom_call.1} parent=1 // pred_check
      _
    $region7: #{tpu_custom_call.1} parent=1 // pred_check_branch
      %25 = sbr.rel (0) target = $region9
    $region8: #{tpu_custom_call.1} parent=1 // pred_region
      %27 = vsyncadd [#allocation6], 0
      %s28 = sshll.u32 %s1, 4
      %s29 = int_to_ptr.hbm [resolvable:$true] %s28
      %s30 = sshll.u32 [#allocation5], 4
      %s31 = int_to_ptr.vmem [resolvable:$true] %s30
      %36 = dma.hbm_to_vmem [thread:$0]  %s29, 16384, %s31, [#allocation6], 512, 512, 32
    $region9: #{tpu_custom_call.1} parent=1 // pred_fallthru
      _
    // Predicated region
    $region10: #{tpu_custom_call.1} parent=1 // pred_check
      _
    $region11: #{tpu_custom_call.1} parent=1 // pred_check_branch
      %38 = sbr.rel (0) target = $region13
    $region12: #{tpu_custom_call.1} parent=1 // pred_region
      %40 = vsyncadd [#allocation6], 0
      %s42 = sshll.u32 %s2, 4
      %s43 = int_to_ptr.hbm [resolvable:$true] %s42
      %s44 = sshll.u32 [#allocation7], 4
      %s45 = int_to_ptr.vmem [resolvable:$true] %s44
      %47 = dma.hbm_to_vmem [thread:$0]  %s43, 64, %s45, [#allocation6]
    $region13: #{tpu_custom_call.1} parent=1 // pred_fallthru
      _
    // Predicated region
    $region14: #{tpu_custom_call.1} parent=1 // pred_check
      _
    $region15: #{tpu_custom_call.1} parent=1 // pred_check_branch
      %49 = sbr.rel (0) target = $region17
    $region16: #{tpu_custom_call.1} parent=1 // pred_region
      _
    $region17: #{tpu_custom_call.1} parent=1 // pred_fallthru
      _
    // Predicated region
    $region18: #{tpu_custom_call.1} parent=1 // pred_check
      _
    $region19: #{tpu_custom_call.1} parent=1 // pred_check_branch
      %51 = sbr.rel (0) target = $region21
    $region20: #{tpu_custom_call.1} parent=1 // pred_region
      _
    $region21: #{tpu_custom_call.1} parent=1 // pred_fallthru
      _
    // Predicated region
    $region22: #{tpu_custom_call.1} parent=1 // pred_check
      _
    $region23: #{tpu_custom_call.1} parent=1 // pred_check_branch
      %53 = sbr.rel (0) target = $region25
    $region24: #{tpu_custom_call.1} parent=1 // pred_region
      %55 = dma.done [#allocation3], 256
    $region25: #{tpu_custom_call.1} parent=1 // pred_fallthru
      _
    // Predicated region
    $region26: #{tpu_custom_call.1} parent=1 // pred_check
      _
    $region27: #{tpu_custom_call.1} parent=1 // pred_check_branch
      %57 = sbr.rel (0) target = $region29
    $region28: #{tpu_custom_call.1} parent=1 // pred_region
      %59 = dma.done [#allocation6], 16384
    $region29: #{tpu_custom_call.1} parent=1 // pred_fallthru
      _
    // Predicated region
    $region30: #{tpu_custom_call.1} parent=1 // pred_check
      _
    $region31: #{tpu_custom_call.1} parent=1 // pred_check_branch
      %61 = sbr.rel (0) target = $region33
    $region32: #{tpu_custom_call.1} parent=1 // pred_region
      %63 = dma.done [#allocation6], 64
    $region33: #{tpu_custom_call.1} parent=1 // pred_fallthru
      _
    %v64 = vld [vmem:[#allocation2] sm:$0xff]
    %v65 = vld [vmem:[#allocation2 + $0x8] sm:$0xff]
    %v66 = vld [vmem:[%s3] sm:$0x1]
    %v67 = vld [vmem:[%s4] sm:$0x1]
    %v68 = vld [vmem:[#allocation5] sm:$0xff]
    %v69 = vld [vmem:[#allocation5 + $0x20] sm:$0xff]
    %v70 = vld [vmem:[#allocation5 + $0x40] sm:$0xff]
    %v71 = vld [vmem:[#allocation5 + $0x60] sm:$0xff]
    %v72 = vld [vmem:[#allocation5 + $0x80] sm:$0xff]
    %v73 = vld [vmem:[#allocation5 + $0xa0] sm:$0xff]
    %v74 = vld [vmem:[#allocation5 + $0xc0] sm:$0xff]
    %v75 = vld [vmem:[#allocation5 + $0xe0] sm:$0xff]
    %v76 = vld [vmem:[#allocation5 + $0x100] sm:$0xff]
    %v77 = vld [vmem:[#allocation5 + $0x120] sm:$0xff]
    %v78 = vld [vmem:[#allocation5 + $0x140] sm:$0xff]
    %v79 = vld [vmem:[#allocation5 + $0x160] sm:$0xff]
    %v80 = vld [vmem:[#allocation5 + $0x180] sm:$0xff]
    %v81 = vld [vmem:[#allocation5 + $0x1a0] sm:$0xff]
    %v82 = vld [vmem:[#allocation5 + $0x1c0] sm:$0xff]
    %v83 = vld [vmem:[#allocation5 + $0x1e0] sm:$0xff]
    %v84 = vld [vmem:[#allocation5 + $0x200] sm:$0xff]
    %v85 = vld [vmem:[#allocation5 + $0x220] sm:$0xff]
    %v86 = vld [vmem:[#allocation5 + $0x240] sm:$0xff]
    %v87 = vld [vmem:[#allocation5 + $0x260] sm:$0xff]
    %v88 = vld [vmem:[#allocation5 + $0x280] sm:$0xff]
    %v89 = vld [vmem:[#allocation5 + $0x2a0] sm:$0xff]
    %v90 = vld [vmem:[#allocation5 + $0x2c0] sm:$0xff]
    %v91 = vld [vmem:[#allocation5 + $0x2e0] sm:$0xff]
    %v92 = vld [vmem:[#allocation5 + $0x300] sm:$0xff]
    %v93 = vld [vmem:[#allocation5 + $0x320] sm:$0xff]
    %v94 = vld [vmem:[#allocation5 + $0x340] sm:$0xff]
    %v95 = vld [vmem:[#allocation5 + $0x360] sm:$0xff]
    %v96 = vld [vmem:[#allocation5 + $0x380] sm:$0xff]
    %v97 = vld [vmem:[#allocation5 + $0x3a0] sm:$0xff]
    %v98 = vld [vmem:[#allocation5 + $0x3c0] sm:$0xff]
    %v99 = vld [vmem:[#allocation5 + $0x3e0] sm:$0xff]
    %v100 = vld [vmem:[#allocation7] sm:$0x1]
    %v102 = vperm.slane %v100, 0
    %104 = vmatpush.msra.mxu0 %v83
    %105 = vmatpush.msra.mxu0 %v82
    %106 = vmatpush.msra.mxu0 %v81
    %107 = vmatpush.msra.mxu0 %v80
    %108 = vmatpush.msra.mxu0 %v79
    %109 = vmatpush.msra.mxu0 %v78
    %110 = vmatpush.msra.mxu0 %v77
    %111 = vmatpush.msra.mxu0 %v76
    %112 = vmatpush.msra.mxu0 %v75
    %113 = vmatpush.msra.mxu0 %v74
    %114 = vmatpush.msra.mxu0 %v73
    %115 = vmatpush.msra.mxu0 %v72
    %116 = vmatpush.msra.mxu0 %v71
    %117 = vmatpush.msra.mxu0 %v70
    %118 = vmatpush.msra.mxu0 %v69
    %119 = vmatpush.msra.mxu0 %v68
    %120 = vmatmul.f32.gmra.mxu0 %v64
    %v121 = vpop.f32.mrf.mxu0
    %v122 = vadd.f32 %v102, %v121
    %123 = vdwg.mxu0
    %124 = vmatpush.msra.mxu0 %v99
    %125 = vmatpush.msra.mxu0 %v98
    %126 = vmatpush.msra.mxu0 %v97
    %127 = vmatpush.msra.mxu0 %v96
    %128 = vmatpush.msra.mxu0 %v95
    %129 = vmatpush.msra.mxu0 %v94
    %130 = vmatpush.msra.mxu0 %v93
    %131 = vmatpush.msra.mxu0 %v92
    %132 = vmatpush.msra.mxu0 %v91
    %133 = vmatpush.msra.mxu0 %v90
    %134 = vmatpush.msra.mxu0 %v89
    %135 = vmatpush.msra.mxu0 %v88
    %136 = vmatpush.msra.mxu0 %v87
    %137 = vmatpush.msra.mxu0 %v86
    %138 = vmatpush.msra.mxu0 %v85
    %139 = vmatpush.msra.mxu0 %v84
    %140 = vmatmul.f32.gmra.mxu0 %v65
    %v141 = vpop.f32.mrf.mxu0
    %v142 = vadd.f32 %v122, %v141
    %143 = vdwg.mxu0
    %144 = vadd.xlane.f32.xlu0 %v142
    %v145 = vpop.xlane.xlu0 %144
    %v146 = vrcp.pop 128.0
    %v147 = vmul.f32 128.0, %v146
    %v148 = vsub.f32 1.0, %v147
    %v149 = vmul.f32 %v146, %v148
    %v150 = vadd.f32 %v146, %v149
    %vm151 = vweird.f32 %v146
    %v152 = vsel %vm151, %v146, %v150
    %v153 = vmul.f32 %v145, %v152
    %v154 = vsub.f32 %v142, %v153
    %v155 = vmul.f32 %v154, %v154
    %156 = vadd.xlane.f32.xlu0 %v155
    %v157 = vpop.xlane.xlu0 %156
    %v158 = vmul.f32 %v157, %v152
    %v159 = vadd.f32 %v158, 1e-05
    %v160 = vrsqrt.pop %v159
    %v161 = vmul.f32 %v160, %v159
    %v162 = vmul.f32 %v161, %v160
    %v163 = vmul.f32 0.5, %v162
    %v164 = vsub.f32 1.5, %v163
    %v165 = vmul.f32 %v160, %v164
    %vm166 = vweird.f32 %v159
    %vm167 = vweird.f32 %v160
    %vm168 = vmor %vm166, %vm167
    %v169 = vsel %vm168, %v160, %v165
    %v170 = vmul.f32 %v154, %v169
    %v172 = vperm.slane %v66, 0
    %v174 = vmul.f32 %v170, %v172
    %v176 = vperm.slane %v67, 0
    %v178 = vadd.f32 %v174, %v176
    %179 = vst [vmem:[#allocation8] sm:$0xff] %v178
    %v180 = vld [vmem:[#allocation5 + $0x8] sm:$0xff]
    %v181 = vld [vmem:[#allocation5 + $0x28] sm:$0xff]
    %v182 = vld [vmem:[#allocation5 + $0x48] sm:$0xff]
    %v183 = vld [vmem:[#allocation5 + $0x68] sm:$0xff]
    %v184 = vld [vmem:[#allocation5 + $0x88] sm:$0xff]
    %v185 = vld [vmem:[#allocation5 + $0xa8] sm:$0xff]
    %v186 = vld [vmem:[#allocation5 + $0xc8] sm:$0xff]
    %v187 = vld [vmem:[#allocation5 + $0xe8] sm:$0xff]
    %v188 = vld [vmem:[#allocation5 + $0x108] sm:$0xff]
    %v189 = vld [vmem:[#allocation5 + $0x128] sm:$0xff]
    %v190 = vld [vmem:[#allocation5 + $0x148] sm:$0xff]
    %v191 = vld [vmem:[#allocation5 + $0x168] sm:$0xff]
    %v192 = vld [vmem:[#allocation5 + $0x188] sm:$0xff]
    %v193 = vld [vmem:[#allocation5 + $0x1a8] sm:$0xff]
    %v194 = vld [vmem:[#allocation5 + $0x1c8] sm:$0xff]
    %v195 = vld [vmem:[#allocation5 + $0x1e8] sm:$0xff]
    %v196 = vld [vmem:[#allocation5 + $0x208] sm:$0xff]
    %v197 = vld [vmem:[#allocation5 + $0x228] sm:$0xff]
    %v198 = vld [vmem:[#allocation5 + $0x248] sm:$0xff]
    %v199 = vld [vmem:[#allocation5 + $0x268] sm:$0xff]
    %v200 = vld [vmem:[#allocation5 + $0x288] sm:$0xff]
    %v201 = vld [vmem:[#allocation5 + $0x2a8] sm:$0xff]
    %v202 = vld [vmem:[#allocation5 + $0x2c8] sm:$0xff]
    %v203 = vld [vmem:[#allocation5 + $0x2e8] sm:$0xff]
    %v204 = vld [vmem:[#allocation5 + $0x308] sm:$0xff]
    %v205 = vld [vmem:[#allocation5 + $0x328] sm:$0xff]
    %v206 = vld [vmem:[#allocation5 + $0x348] sm:$0xff]
    %v207 = vld [vmem:[#allocation5 + $0x368] sm:$0xff]
    %v208 = vld [vmem:[#allocation5 + $0x388] sm:$0xff]
    %v209 = vld [vmem:[#allocation5 + $0x3a8] sm:$0xff]
    %v210 = vld [vmem:[#allocation5 + $0x3c8] sm:$0xff]
    %v211 = vld [vmem:[#allocation5 + $0x3e8] sm:$0xff]
    %v212 = vld [vmem:[#allocation7 + $0x1] sm:$0x1]
    %v214 = vperm.slane %v212, 0
    %216 = vmatpush.msra.mxu0 %v195
    %217 = vmatpush.msra.mxu0 %v194
    %218 = vmatpush.msra.mxu0 %v193
    %219 = vmatpush.msra.mxu0 %v192
    %220 = vmatpush.msra.mxu0 %v191
    %221 = vmatpush.msra.mxu0 %v190
    %222 = vmatpush.msra.mxu0 %v189
    %223 = vmatpush.msra.mxu0 %v188
    %224 = vmatpush.msra.mxu0 %v187
    %225 = vmatpush.msra.mxu0 %v186
    %226 = vmatpush.msra.mxu0 %v185
    %227 = vmatpush.msra.mxu0 %v184
    %228 = vmatpush.msra.mxu0 %v183
    %229 = vmatpush.msra.mxu0 %v182
    %230 = vmatpush.msra.mxu0 %v181
    %231 = vmatpush.msra.mxu0 %v180
    %232 = vmatmul.f32.gmra.mxu0 %v64
    %v233 = vpop.f32.mrf.mxu0
    %v234 = vadd.f32 %v214, %v233
    %235 = vdwg.mxu0
    %236 = vmatpush.msra.mxu0 %v211
    %237 = vmatpush.msra.mxu0 %v210
    %238 = vmatpush.msra.mxu0 %v209
    %239 = vmatpush.msra.mxu0 %v208
    %240 = vmatpush.msra.mxu0 %v207
    %241 = vmatpush.msra.mxu0 %v206
    %242 = vmatpush.msra.mxu0 %v205
    %243 = vmatpush.msra.mxu0 %v204
    %244 = vmatpush.msra.mxu0 %v203
    %245 = vmatpush.msra.mxu0 %v202
    %246 = vmatpush.msra.mxu0 %v201
    %247 = vmatpush.msra.mxu0 %v200
    %248 = vmatpush.msra.mxu0 %v199
    %249 = vmatpush.msra.mxu0 %v198
    %250 = vmatpush.msra.mxu0 %v197
    %251 = vmatpush.msra.mxu0 %v196
    %252 = vmatmul.f32.gmra.mxu0 %v65
    %v253 = vpop.f32.mrf.mxu0
    %v254 = vadd.f32 %v234, %v253
    %255 = vdwg.mxu0
    %256 = vadd.xlane.f32.xlu0 %v254
    %v257 = vpop.xlane.xlu0 %256
    %v258 = vmul.f32 %v257, %v152
    %v259 = vsub.f32 %v254, %v258
    %v260 = vmul.f32 %v259, %v259
    %261 = vadd.xlane.f32.xlu0 %v260
    %v262 = vpop.xlane.xlu0 %261
    %v263 = vmul.f32 %v262, %v152
    %v264 = vadd.f32 %v263, 1e-05
    %v265 = vrsqrt.pop %v264
    %v266 = vmul.f32 %v265, %v264
    %v267 = vmul.f32 %v266, %v265
    %v268 = vmul.f32 0.5, %v267
    %v269 = vsub.f32 1.5, %v268
    %v270 = vmul.f32 %v265, %v269
    %vm271 = vweird.f32 %v264
    %vm272 = vweird.f32 %v265
    %vm273 = vmor %vm271, %vm272
    %v274 = vsel %vm273, %v265, %v270
    %v275 = vmul.f32 %v259, %v274
    %v276 = vmul.f32 %v275, %v172
    %v277 = vadd.f32 %v276, %v176
    %278 = vst [vmem:[#allocation8 + $0x8] sm:$0xff] %v277
    %v279 = vld [vmem:[#allocation5 + $0x10] sm:$0xff]
    %v280 = vld [vmem:[#allocation5 + $0x30] sm:$0xff]
    %v281 = vld [vmem:[#allocation5 + $0x50] sm:$0xff]
    %v282 = vld [vmem:[#allocation5 + $0x70] sm:$0xff]
    %v283 = vld [vmem:[#allocation5 + $0x90] sm:$0xff]
    %v284 = vld [vmem:[#allocation5 + $0xb0] sm:$0xff]
    %v285 = vld [vmem:[#allocation5 + $0xd0] sm:$0xff]
    %v286 = vld [vmem:[#allocation5 + $0xf0] sm:$0xff]
    %v287 = vld [vmem:[#allocation5 + $0x110] sm:$0xff]
    %v288 = vld [vmem:[#allocation5 + $0x130] sm:$0xff]
    %v289 = vld [vmem:[#allocation5 + $0x150] sm:$0xff]
    %v290 = vld [vmem:[#allocation5 + $0x170] sm:$0xff]
    %v291 = vld [vmem:[#allocation5 + $0x190] sm:$0xff]
    %v292 = vld [vmem:[#allocation5 + $0x1b0] sm:$0xff]
    %v293 = vld [vmem:[#allocation5 + $0x1d0] sm:$0xff]
    %v294 = vld [vmem:[#allocation5 + $0x1f0] sm:$0xff]
    %v295 = vld [vmem:[#allocation5 + $0x210] sm:$0xff]
    %v296 = vld [vmem:[#allocation5 + $0x230] sm:$0xff]
    %v297 = vld [vmem:[#allocation5 + $0x250] sm:$0xff]
    %v298 = vld [vmem:[#allocation5 + $0x270] sm:$0xff]
    %v299 = vld [vmem:[#allocation5 + $0x290] sm:$0xff]
    %v300 = vld [vmem:[#allocation5 + $0x2b0] sm:$0xff]
    %v301 = vld [vmem:[#allocation5 + $0x2d0] sm:$0xff]
    %v302 = vld [vmem:[#allocation5 + $0x2f0] sm:$0xff]
    %v303 = vld [vmem:[#allocation5 + $0x310] sm:$0xff]
    %v304 = vld [vmem:[#allocation5 + $0x330] sm:$0xff]
    %v305 = vld [vmem:[#allocation5 + $0x350] sm:$0xff]
    %v306 = vld [vmem:[#allocation5 + $0x370] sm:$0xff]
    %v307 = vld [vmem:[#allocation5 + $0x390] sm:$0xff]
    %v308 = vld [vmem:[#allocation5 + $0x3b0] sm:$0xff]
    %v309 = vld [vmem:[#allocation5 + $0x3d0] sm:$0xff]
    %v310 = vld [vmem:[#allocation5 + $0x3f0] sm:$0xff]
    %v311 = vld [vmem:[#allocation7 + $0x2] sm:$0x1]
    %v313 = vperm.slane %v311, 0
    %315 = vmatpush.msra.mxu0 %v294
    %316 = vmatpush.msra.mxu0 %v293
    %317 = vmatpush.msra.mxu0 %v292
    %318 = vmatpush.msra.mxu0 %v291
    %319 = vmatpush.msra.mxu0 %v290
    %320 = vmatpush.msra.mxu0 %v289
    %321 = vmatpush.msra.mxu0 %v288
    %322 = vmatpush.msra.mxu0 %v287
    %323 = vmatpush.msra.mxu0 %v286
    %324 = vmatpush.msra.mxu0 %v285
    %325 = vmatpush.msra.mxu0 %v284
    %326 = vmatpush.msra.mxu0 %v283
    %327 = vmatpush.msra.mxu0 %v282
    %328 = vmatpush.msra.mxu0 %v281
    %329 = vmatpush.msra.mxu0 %v280
    %330 = vmatpush.msra.mxu0 %v279
    %331 = vmatmul.f32.gmra.mxu0 %v64
    %v332 = vpop.f32.mrf.mxu0
    %v333 = vadd.f32 %v313, %v332
    %334 = vdwg.mxu0
    %335 = vmatpush.msra.mxu0 %v310
    %336 = vmatpush.msra.mxu0 %v309
    %337 = vmatpush.msra.mxu0 %v308
    %338 = vmatpush.msra.mxu0 %v307
    %339 = vmatpush.msra.mxu0 %v306
    %340 = vmatpush.msra.mxu0 %v305
    %341 = vmatpush.msra.mxu0 %v304
    %342 = vmatpush.msra.mxu0 %v303
    %343 = vmatpush.msra.mxu0 %v302
    %344 = vmatpush.msra.mxu0 %v301
    %345 = vmatpush.msra.mxu0 %v300
    %346 = vmatpush.msra.mxu0 %v299
    %347 = vmatpush.msra.mxu0 %v298
    %348 = vmatpush.msra.mxu0 %v297
    %349 = vmatpush.msra.mxu0 %v296
    %350 = vmatpush.msra.mxu0 %v295
    %351 = vmatmul.f32.gmra.mxu0 %v65
    %v352 = vpop.f32.mrf.mxu0
    %v353 = vadd.f32 %v333, %v352
    %354 = vdwg.mxu0
    %355 = vadd.xlane.f32.xlu0 %v353
    %v356 = vpop.xlane.xlu0 %355
    %v357 = vmul.f32 %v356, %v152
    %v358 = vsub.f32 %v353, %v357
    %v359 = vmul.f32 %v358, %v358
    %360 = vadd.xlane.f32.xlu0 %v359
    %v361 = vpop.xlane.xlu0 %360
    %v362 = vmul.f32 %v361, %v152
    %v363 = vadd.f32 %v362, 1e-05
    %v364 = vrsqrt.pop %v363
    %v365 = vmul.f32 %v364, %v363
    %v366 = vmul.f32 %v365, %v364
    %v367 = vmul.f32 0.5, %v366
    %v368 = vsub.f32 1.5, %v367
    %v369 = vmul.f32 %v364, %v368
    %vm370 = vweird.f32 %v363
    %vm371 = vweird.f32 %v364
    %vm372 = vmor %vm370, %vm371
    %v373 = vsel %vm372, %v364, %v369
    %v374 = vmul.f32 %v358, %v373
    %v375 = vmul.f32 %v374, %v172
    %v376 = vadd.f32 %v375, %v176
    %377 = vst [vmem:[#allocation8 + $0x10] sm:$0xff] %v376
    %v378 = vld [vmem:[#allocation5 + $0x18] sm:$0xff]
    %v379 = vld [vmem:[#allocation5 + $0x38] sm:$0xff]
    %v380 = vld [vmem:[#allocation5 + $0x58] sm:$0xff]
    %v381 = vld [vmem:[#allocation5 + $0x78] sm:$0xff]
    %v382 = vld [vmem:[#allocation5 + $0x98] sm:$0xff]
    %v383 = vld [vmem:[#allocation5 + $0xb8] sm:$0xff]
    %v384 = vld [vmem:[#allocation5 + $0xd8] sm:$0xff]
    %v385 = vld [vmem:[#allocation5 + $0xf8] sm:$0xff]
    %v386 = vld [vmem:[#allocation5 + $0x118] sm:$0xff]
    %v387 = vld [vmem:[#allocation5 + $0x138] sm:$0xff]
    %v388 = vld [vmem:[#allocation5 + $0x158] sm:$0xff]
    %v389 = vld [vmem:[#allocation5 + $0x178] sm:$0xff]
    %v390 = vld [vmem:[#allocation5 + $0x198] sm:$0xff]
    %v391 = vld [vmem:[#allocation5 + $0x1b8] sm:$0xff]
    %v392 = vld [vmem:[#allocation5 + $0x1d8] sm:$0xff]
    %v393 = vld [vmem:[#allocation5 + $0x1f8] sm:$0xff]
    %v394 = vld [vmem:[#allocation5 + $0x218] sm:$0xff]
    %v395 = vld [vmem:[#allocation5 + $0x238] sm:$0xff]
    %v396 = vld [vmem:[#allocation5 + $0x258] sm:$0xff]
    %v397 = vld [vmem:[#allocation5 + $0x278] sm:$0xff]
    %v398 = vld [vmem:[#allocation5 + $0x298] sm:$0xff]
    %v399 = vld [vmem:[#allocation5 + $0x2b8] sm:$0xff]
    %v400 = vld [vmem:[#allocation5 + $0x2d8] sm:$0xff]
    %v401 = vld [vmem:[#allocation5 + $0x2f8] sm:$0xff]
    %v402 = vld [vmem:[#allocation5 + $0x318] sm:$0xff]
    %v403 = vld [vmem:[#allocation5 + $0x338] sm:$0xff]
    %v404 = vld [vmem:[#allocation5 + $0x358] sm:$0xff]
    %v405 = vld [vmem:[#allocation5 + $0x378] sm:$0xff]
    %v406 = vld [vmem:[#allocation5 + $0x398] sm:$0xff]
    %v407 = vld [vmem:[#allocation5 + $0x3b8] sm:$0xff]
    %v408 = vld [vmem:[#allocation5 + $0x3d8] sm:$0xff]
    %v409 = vld [vmem:[#allocation5 + $0x3f8] sm:$0xff]
    %v410 = vld [vmem:[#allocation7 + $0x3] sm:$0x1]
    %v412 = vperm.slane %v410, 0
    %414 = vmatpush.msra.mxu0 %v393
    %415 = vmatpush.msra.mxu0 %v392
    %416 = vmatpush.msra.mxu0 %v391
    %417 = vmatpush.msra.mxu0 %v390
    %418 = vmatpush.msra.mxu0 %v389
    %419 = vmatpush.msra.mxu0 %v388
    %420 = vmatpush.msra.mxu0 %v387
    %421 = vmatpush.msra.mxu0 %v386
    %422 = vmatpush.msra.mxu0 %v385
    %423 = vmatpush.msra.mxu0 %v384
    %424 = vmatpush.msra.mxu0 %v383
    %425 = vmatpush.msra.mxu0 %v382
    %426 = vmatpush.msra.mxu0 %v381
    %427 = vmatpush.msra.mxu0 %v380
    %428 = vmatpush.msra.mxu0 %v379
    %429 = vmatpush.msra.mxu0 %v378
    %430 = vmatmul.f32.gmra.mxu0 %v64
    %v431 = vpop.f32.mrf.mxu0
    %v432 = vadd.f32 %v412, %v431
    %433 = vdwg.mxu0
    %434 = vmatpush.msra.mxu0 %v409
    %435 = vmatpush.msra.mxu0 %v408
    %436 = vmatpush.msra.mxu0 %v407
    %437 = vmatpush.msra.mxu0 %v406
    %438 = vmatpush.msra.mxu0 %v405
    %439 = vmatpush.msra.mxu0 %v404
    %440 = vmatpush.msra.mxu0 %v403
    %441 = vmatpush.msra.mxu0 %v402
    %442 = vmatpush.msra.mxu0 %v401
    %443 = vmatpush.msra.mxu0 %v400
    %444 = vmatpush.msra.mxu0 %v399
    %445 = vmatpush.msra.mxu0 %v398
    %446 = vmatpush.msra.mxu0 %v397
    %447 = vmatpush.msra.mxu0 %v396
    %448 = vmatpush.msra.mxu0 %v395
    %449 = vmatpush.msra.mxu0 %v394
    %450 = vmatmul.f32.gmra.mxu0 %v65
    %v451 = vpop.f32.mrf.mxu0
    %v452 = vadd.f32 %v432, %v451
    %453 = vdwg.mxu0
    %454 = vadd.xlane.f32.xlu0 %v452
    %v455 = vpop.xlane.xlu0 %454
    %v456 = vmul.f32 %v455, %v152
    %v457 = vsub.f32 %v452, %v456
    %v458 = vmul.f32 %v457, %v457
    %459 = vadd.xlane.f32.xlu0 %v458
    %v460 = vpop.xlane.xlu0 %459
    %v461 = vmul.f32 %v460, %v152
    %v462 = vadd.f32 %v461, 1e-05
    %v463 = vrsqrt.pop %v462
    %v464 = vmul.f32 %v463, %v462
    %v465 = vmul.f32 %v464, %v463
    %v466 = vmul.f32 0.5, %v465
    %v467 = vsub.f32 1.5, %v466
    %v468 = vmul.f32 %v463, %v467
    %vm469 = vweird.f32 %v462
    %vm470 = vweird.f32 %v463
    %vm471 = vmor %vm469, %vm470
    %v472 = vsel %vm471, %v463, %v468
    %v473 = vmul.f32 %v457, %v472
    %v474 = vmul.f32 %v473, %v172
    %v475 = vadd.f32 %v474, %v176
    %476 = vst [vmem:[#allocation8 + $0x18] sm:$0xff] %v475
    // Predicated region
    $region34: #{tpu_custom_call.1} parent=1 // pred_check
      _
    $region35: #{tpu_custom_call.1} parent=1 // pred_check_branch
      %478 = sbr.rel (0) target = $region37
    $region36: #{tpu_custom_call.1} parent=1 // pred_region
      %480 = vsyncadd [#allocation4], 0
      %s482 = sshll.u32 [#allocation8], 4
      %s483 = int_to_ptr.vmem [resolvable:$true] %s482
      %s484 = sshll.u32 %s5, 4
      %s485 = int_to_ptr.hbm [resolvable:$true] %s484
      %487 = dma.vmem_to_hbm [thread:$0]  %s483, 512, %s485, [#allocation4]
    $region37: #{tpu_custom_call.1} parent=1 // pred_fallthru
      _
    // Predicated region
    $region38: #{tpu_custom_call.1} parent=1 // pred_check
      _
    $region39: #{tpu_custom_call.1} parent=1 // pred_check_branch
      %489 = sbr.rel (0) target = $region41
    $region40: #{tpu_custom_call.1} parent=1 // pred_region
      %491 = dma.done [#allocation4], 512
    $region41: #{tpu_custom_call.1} parent=1 // pred_fallthru
      _
    %492 = vsyncpa [#allocation3], 1
    %493 = vsyncpa [#allocation6], 1
    %494 = vsyncpa [#allocation4], 1

</llo_original>
